<compile_context>
chip_gen: v6e
topology: v6e:2x2x1
jax: 0.10.0
libtpu: 0.0.40
codegen_flags: <defaults>
</compile_context>

<pallas_src>
import functools

import jax
import jax.numpy as jnp
from jax.experimental import pallas as pl
from jax.experimental.pallas import tpu as pltpu


def a_cse_kernel(x_ref, w0_ref, b0_ref, w1_ref, b1_ref, w2_ref, b2_ref, out_ref,
                 *, mxu_dtype):
    # x_ref  : (Bblk, C, L)  channels-first slabs (PyTorch NCL layout)
    # w0_ref : (3, C, C)     conv0 taps, BN folded; tap k multiplies x[:, l-1+k]
    # b0_ref : (C, 1)
    # w1_ref : (Ch, C), b1_ref: (Ch, 1)
    # w2_ref : (C, Ch), b2_ref: (C, 1)
    # out_ref: (Bblk, C, L)
    Bblk, C, L = out_ref.shape
    Lc = Bblk * L

    # Concatenate the Bblk slabs along the lane axis -> one wide-N conv matmul.
    xs = [x_ref[b] for b in range(Bblk)]                       # Bblk x (C, L)
    xc = xs[0] if Bblk == 1 else jnp.concatenate(xs, axis=1)   # (C, Bblk*L)

    # Length +/-1 shifts via XLU roll on the lane axis.  Wrapped columns
    # (including cross-slab leakage) are exactly the per-slab boundary columns,
    # which Conv1d zero padding requires to be 0 anyway -> one (1, Lc) mask
    # per shift, scalar 0.0 fill.
    lane = jax.lax.broadcasted_iota(jnp.int32, (1, Lc), 1)
    lmod = lane % L
    x_m1 = jnp.where(lmod == 0, 0.0, pltpu.roll(xc, shift=1, axis=1))           # x[:, l-1]
    x_p1 = jnp.where(lmod == L - 1, 0.0, pltpu.roll(xc, shift=Lc - 1, axis=1))  # x[:, l+1]

    # ---- conv0 (k=3, pad=1, BN folded): three accumulating MXU dots ----------
    md = mxu_dtype
    h = jnp.dot(w0_ref[0].astype(md), x_m1.astype(md),
                preferred_element_type=jnp.float32)
    h = h + jnp.dot(w0_ref[1].astype(md), xc.astype(md),
                    preferred_element_type=jnp.float32)
    h = h + jnp.dot(w0_ref[2].astype(md), x_p1.astype(md),
                    preferred_element_type=jnp.float32)
    h = jnp.maximum(h + b0_ref[...], 0.0)                      # (C, Bblk*L)

    # ---- per-sample global average pool over length (lane-aligned slices) ----
    z_cols = [jnp.mean(h[:, b * L:(b + 1) * L], axis=1, keepdims=True)
              for b in range(Bblk)]
    z = z_cols[0] if Bblk == 1 else jnp.concatenate(z_cols, axis=1)   # (C, Bblk)

    # ---- squeeze / excite 1x1 convs (BN folded; tiny -> keep f32) ------------
    z1 = jnp.maximum(jnp.dot(w1_ref[...], z, preferred_element_type=jnp.float32)
                     + b1_ref[...], 0.0)                       # (Ch, Bblk)
    z2 = jnp.dot(w2_ref[...], z1, preferred_element_type=jnp.float32) + b2_ref[...]
    s1 = jax.nn.sigmoid(z2) + 1.0                              # (C, Bblk); x*s + x == x*(s+1)

    # ---- residual channel re-weighting; lane-dense (C, L) stores -------------
    for b in range(Bblk):
        out_ref[b] = (xs[b] * s1[:, b:b + 1]).astype(out_ref.dtype)


def a_cse_pallas(x, w0_taps, b0, w1, b1, w2, b2, *, bblk=2,
                 mxu_dtype=jnp.bfloat16, vmem_limit_bytes=32 * 1024 * 1024):
    """x: (B, C, L) channels-first (PyTorch NCL).  Returns (B, C, L).

    L should be a multiple of 128 for lane-dense, unmasked stores (pad in the
    wrapper otherwise).  Any future tiling of C or L must respect the (8, 128)
    rule, and tiling L turns the pool into a two-pass cross-tile accumulation.
    vmem_limit_bytes: keep <= ~56 MiB on v7x (64 MiB physical); v5e/v6e can go
    toward 96-100 MiB for large C*L slabs.
    """
    B, C, L = x.shape
    Ch = w1.shape[0]
    if B % bblk != 0:
        bblk = 1                       # fallback; keeps the grid well-formed
    grid = (B // bblk,)
    itemsize = jnp.dtype(x.dtype).itemsize

    flops = int(B * (6 * L * C * C + 4 * C * Ch + 3 * L * C))
    bytes_accessed = int((2 * B * C * L + 3 * C * C + 2 * C * Ch + 2 * C + Ch) * itemsize)
    cost = pl.CostEstimate(flops=flops, transcendentals=int(B * C),
                           bytes_accessed=bytes_accessed)

    # Grid-invariant weights/biases: constant index_map (never re-DMA'd) and a
    # single pipeline buffer instead of the default two.
    inv = functools.partial(pl.BlockSpec, pipeline_mode=pl.Buffered(1))

    grid_spec = pltpu.PrefetchScalarGridSpec(
        num_scalar_prefetch=0,
        grid=grid,
        in_specs=[
            pl.BlockSpec((bblk, C, L), lambda i: (i, 0, 0)),   # x slabs
            inv((3, C, C), lambda i: (0, 0, 0)),               # conv0 taps
            inv((C, 1), lambda i: (0, 0)),
            inv((Ch, C), lambda i: (0, 0)),
            inv((Ch, 1), lambda i: (0, 0)),
            inv((C, Ch), lambda i: (0, 0)),
            inv((C, 1), lambda i: (0, 0)),
        ],
        out_specs=pl.BlockSpec((bblk, C, L), lambda i: (i, 0, 0)),
    )

    kernel = functools.partial(a_cse_kernel, mxu_dtype=mxu_dtype)
    return pl.pallas_call(
        kernel,
        out_shape=jax.ShapeDtypeStruct((B, C, L), x.dtype),
        grid_spec=grid_spec,
        compiler_params=pltpu.CompilerParams(
            dimension_semantics=("parallel",),
            vmem_limit_bytes=vmem_limit_bytes,
        ),
        cost_estimate=cost,
    )(x, w0_taps, b0, w1, b1, w2, b2)


# ----------------------------- parameter prep --------------------------------

def _fold_bn_outch(w, b, gamma, beta, mean, var, eps=1e-5):
    """Fold inference-mode BatchNorm1d into a conv whose OUTPUT channels are axis 0."""
    scale = gamma / jnp.sqrt(var + eps)
    return w * scale.reshape((-1,) + (1,) * (w.ndim - 1)), (b - mean) * scale + beta


def prepare_params(w0_t, b0_t, w1_t, b1_t, w2_t, b2_t,
                   bn0=None, bn1=None, bn2=None, eps=1e-5):
    """PyTorch layouts: w0_t (C,C,3), w1_t (Ch,C,1), w2_t (C,Ch,1), biases (Cout,).
    bn* = (gamma, beta, running_mean, running_var) or None for default init."""
    C, Ch = w0_t.shape[0], w1_t.shape[0]

    def _bn(bn, n):
        if bn is None:
            return jnp.ones((n,)), jnp.zeros((n,)), jnp.zeros((n,)), jnp.ones((n,))
        return bn

    w0, b0 = _fold_bn_outch(w0_t, b0_t, *_bn(bn0, C), eps=eps)
    w1, b1 = _fold_bn_outch(w1_t[:, :, 0], b1_t, *_bn(bn1, Ch), eps=eps)
    w2, b2 = _fold_bn_outch(w2_t[:, :, 0], b2_t, *_bn(bn2, C), eps=eps)

    # Tap k multiplies x[:, l-1+k]; this must match the kernel's dot order
    # (tap 0 -> x_m1, tap 1 -> x, tap 2 -> x_p1).
    w0_taps = jnp.moveaxis(w0, 2, 0)                       # (3, C, C)
    return (w0_taps, b0.reshape(C, 1), w1, b1.reshape(Ch, 1), w2, b2.reshape(C, 1))


# ----------------------------- pure-JAX reference ----------------------------

def ref_forward(x, w0_t, b0_t, w1_t, b1_t, w2_t, b2_t):
    """Spec-level reference with raw PyTorch params (BatchNorm at default init
    == identity in eval mode)."""
    h = jax.lax.conv_general_dilated(
        x, w0_t, window_strides=(1,), padding=((1, 1),),
        dimension_numbers=("NCH", "OIH", "NCH"))
    h = jnp.maximum(h + b0_t[None, :, None], 0.0)
    z = jnp.mean(h, axis=2, keepdims=True)                               # (B, C, 1)
    z1 = jnp.maximum(jnp.einsum("oi,bil->bol", w1_t[:, :, 0], z) + b1_t[None, :, None], 0.0)
    z2 = jnp.einsum("oi,bil->bol", w2_t[:, :, 0], z1) + b2_t[None, :, None]
    s = jax.nn.sigmoid(z2)
    return x * s + x


if __name__ == "__main__":
    B, C, L = 4, 8, 128          # L=128 keeps stores lane-dense; grid=(2,) feeds both v7x TCs
    Ch = C // 2

    key = jax.random.PRNGKey(0)
    ks = jax.random.split(key, 7)

    # PyTorch-style conv parameters: weight (Cout, Cin, K), bias (Cout,)
    w0_t = jax.random.normal(ks[0], (C, C, 3), jnp.float32) * 0.1
    b0_t = jax.random.normal(ks[1], (C,), jnp.float32) * 0.1
    w1_t = jax.random.normal(ks[2], (Ch, C, 1), jnp.float32) * 0.1
    b1_t = jax.random.normal(ks[3], (Ch,), jnp.float32) * 0.1
    w2_t = jax.random.normal(ks[4], (C, Ch, 1), jnp.float32) * 0.1
    b2_t = jax.random.normal(ks[5], (C,), jnp.float32) * 0.1

    x = jax.random.normal(ks[6], (B, C, L), jnp.float32)    # NCL, as the module expects

    # Default BatchNorm1d (inference): gamma=1, beta=0, mean=0, var=1 -> folded.
    params = prepare_params(w0_t, b0_t, w1_t, b1_t, w2_t, b2_t)
    ref = ref_forward(x, w0_t, b0_t, w1_t, b1_t, w2_t, b2_t)

    # Strict semantic check with f32 MXU operands.
    out_f32 = jax.block_until_ready(a_cse_pallas(x, *params, mxu_dtype=jnp.float32))
    assert out_f32.shape == (B, C, L)
    assert jnp.allclose(out_f32, ref, rtol=1e-5, atol=1e-5), "f32 mismatch vs JAX reference"

    # Production path: bf16 MXU operands (feedback), f32 accumulation/epilogue.
    out_bf16 = jax.block_until_ready(a_cse_pallas(x, *params, mxu_dtype=jnp.bfloat16))
    assert jnp.allclose(out_bf16, ref, rtol=2e-2, atol=2e-2), "bf16 mismatch vs JAX reference"

    print("KERNEL_OK")
</pallas_src>

<mosaic_0001>
module attributes {stable_mosaic.version = 11 : i64} {
  func.func @a_cse_kernel(%arg0: i32, %arg1: memref<2x8x128xf32, #tpu.memory_space<vmem>>, %arg2: memref<3x8x8xf32, #tpu.memory_space<vmem>>, %arg3: memref<8x1xf32, #tpu.memory_space<vmem>>, %arg4: memref<4x8xf32, #tpu.memory_space<vmem>>, %arg5: memref<4x1xf32, #tpu.memory_space<vmem>>, %arg6: memref<8x4xf32, #tpu.memory_space<vmem>>, %arg7: memref<8x1xf32, #tpu.memory_space<vmem>>, %arg8: memref<2x8x128xf32, #tpu.memory_space<vmem>>) attributes {dimension_semantics = [#tpu.dimension_semantics<parallel>], iteration_bounds = array<i64: 2>, scalar_prefetch = 0 : i64, scratch_operands = 0 : i64, tpu.core_type = #tpu.core_type<tc>, window_params = [{transform_indices = @transform_0, window_bounds = array<i64: 2, 8, 128>}, {pipeline_mode = #tpu.pipeline_mode<synchronous>, transform_indices = @transform_1, window_bounds = array<i64: 3, 8, 8>}, {pipeline_mode = #tpu.pipeline_mode<synchronous>, transform_indices = @transform_2, window_bounds = array<i64: 8, 1>}, {pipeline_mode = #tpu.pipeline_mode<synchronous>, transform_indices = @transform_3, window_bounds = array<i64: 4, 8>}, {pipeline_mode = #tpu.pipeline_mode<synchronous>, transform_indices = @transform_4, window_bounds = array<i64: 4, 1>}, {pipeline_mode = #tpu.pipeline_mode<synchronous>, transform_indices = @transform_5, window_bounds = array<i64: 8, 4>}, {pipeline_mode = #tpu.pipeline_mode<synchronous>, transform_indices = @transform_6, window_bounds = array<i64: 8, 1>}, {transform_indices = @transform_7, window_bounds = array<i64: 2, 8, 128>}]} {
    %c0 = arith.constant 0 : index
    %c0_0 = arith.constant 0 : index
    %c0_1 = arith.constant 0 : index
    %0 = vector.load %arg1[%c0, %c0_0, %c0_1] : memref<2x8x128xf32, #tpu.memory_space<vmem>>, vector<1x8x128xf32>
    %1 = vector.shape_cast %0 : vector<1x8x128xf32> to vector<8x128xf32>
    %c1 = arith.constant 1 : index
    %c0_2 = arith.constant 0 : index
    %c0_3 = arith.constant 0 : index
    %2 = vector.load %arg1[%c1, %c0_2, %c0_3] : memref<2x8x128xf32, #tpu.memory_space<vmem>>, vector<1x8x128xf32>
    %3 = vector.shape_cast %2 : vector<1x8x128xf32> to vector<8x128xf32>
    %4 = tpu.concatenate %1, %3 in 1 : vector<8x128xf32>, vector<8x128xf32> -> vector<8x256xf32>
    %5 = tpu.iota {dimensions = array<i32: 1>} : vector<1x256xi32>
    %c128_i32 = arith.constant 128 : i32
    %c0_i32 = arith.constant 0 : i32
    %6 = arith.cmpi eq, %c128_i32, %c0_i32 : i32
    %c1_i32 = arith.constant 1 : i32
    %7 = arith.select %6, %c1_i32, %c128_i32 : i32
    %8 = vector.broadcast %7 : i32 to vector<1x256xi32>
    %9 = arith.remsi %5, %8 : vector<1x256xi32>
    %c0_i32_4 = arith.constant 0 : i32
    %10 = vector.broadcast %c0_i32_4 : i32 to vector<1x256xi32>
    %11 = arith.cmpi ne, %9, %10 : vector<1x256xi32>
    %c0_i32_5 = arith.constant 0 : i32
    %12 = vector.broadcast %c0_i32_5 : i32 to vector<1x256xi32>
    %13 = arith.cmpi slt, %9, %12 : vector<1x256xi32>
    %c0_i32_6 = arith.constant 0 : i32
    %14 = arith.cmpi slt, %7, %c0_i32_6 : i32
    %15 = vector.broadcast %14 : i1 to vector<1x256xi1>
    %16 = vector.broadcast %15 : vector<1x256xi1> to vector<1x256xi1>
    %17 = arith.xori %13, %16 : vector<1x256xi1>
    %18 = arith.andi %17, %11 : vector<1x256xi1>
    %19 = vector.broadcast %7 : i32 to vector<1x256xi32>
    %20 = arith.addi %9, %19 : vector<1x256xi32>
    %21 = arith.select %18, %20, %9 : vector<1x256xi1>, vector<1x256xi32>
    %c0_i32_7 = arith.constant 0 : i32
    %22 = vector.broadcast %c0_i32_7 : i32 to vector<1x256xi32>
    %23 = arith.cmpi eq, %21, %22 : vector<1x256xi32>
    %c1_i32_8 = arith.constant 1 : i32
    %24 = tpu.dynamic_rotate %4 by %c1_i32_8 dim 1 : vector<8x256xf32>, i32 -> vector<8x256xf32>
    %cst = arith.constant 0.000000e+00 : f32
    %25 = vector.shape_cast %23 : vector<1x256xi1> to vector<1x256xi1>
    %26 = vector.broadcast %25 : vector<1x256xi1> to vector<8x256xi1>
    %27 = vector.broadcast %cst : f32 to vector<8x256xf32>
    %28 = arith.select %26, %27, %24 : vector<8x256xi1>, vector<8x256xf32>
    %c127_i32 = arith.constant 127 : i32
    %29 = vector.broadcast %c127_i32 : i32 to vector<1x256xi32>
    %30 = arith.cmpi eq, %21, %29 : vector<1x256xi32>
    %c255_i32 = arith.constant 255 : i32
    %31 = tpu.dynamic_rotate %4 by %c255_i32 dim 1 : vector<8x256xf32>, i32 -> vector<8x256xf32>
    %cst_9 = arith.constant 0.000000e+00 : f32
    %32 = vector.shape_cast %30 : vector<1x256xi1> to vector<1x256xi1>
    %33 = vector.broadcast %32 : vector<1x256xi1> to vector<8x256xi1>
    %34 = vector.broadcast %cst_9 : f32 to vector<8x256xf32>
    %35 = arith.select %33, %34, %31 : vector<8x256xi1>, vector<8x256xf32>
    %c0_10 = arith.constant 0 : index
    %c0_11 = arith.constant 0 : index
    %c0_12 = arith.constant 0 : index
    %36 = vector.load %arg2[%c0_10, %c0_11, %c0_12] : memref<3x8x8xf32, #tpu.memory_space<vmem>>, vector<1x8x8xf32>
    %37 = vector.shape_cast %36 : vector<1x8x8xf32> to vector<8x8xf32>
    %cst_13 = arith.constant dense<0.000000e+00> : vector<8x256xf32>
    %38 = tpu.matmul %37, %28, %cst_13 {dimension_numbers = #tpu.dot_dimension_numbers<[1], [0], [0], [1], [0, 0, 1, 1], [], []>} : vector<8x8xf32>, vector<8x256xf32>, vector<8x256xf32> -> vector<8x256xf32>
    %c1_14 = arith.constant 1 : index
    %c0_15 = arith.constant 0 : index
    %c0_16 = arith.constant 0 : index
    %39 = vector.load %arg2[%c1_14, %c0_15, %c0_16] : memref<3x8x8xf32, #tpu.memory_space<vmem>>, vector<1x8x8xf32>
    %40 = vector.shape_cast %39 : vector<1x8x8xf32> to vector<8x8xf32>
    %cst_17 = arith.constant dense<0.000000e+00> : vector<8x256xf32>
    %41 = tpu.matmul %40, %4, %cst_17 {dimension_numbers = #tpu.dot_dimension_numbers<[1], [0], [0], [1], [0, 0, 1, 1], [], []>} : vector<8x8xf32>, vector<8x256xf32>, vector<8x256xf32> -> vector<8x256xf32>
    %42 = arith.addf %38, %41 : vector<8x256xf32>
    %c2 = arith.constant 2 : index
    %c0_18 = arith.constant 0 : index
    %c0_19 = arith.constant 0 : index
    %43 = vector.load %arg2[%c2, %c0_18, %c0_19] : memref<3x8x8xf32, #tpu.memory_space<vmem>>, vector<1x8x8xf32>
    %44 = vector.shape_cast %43 : vector<1x8x8xf32> to vector<8x8xf32>
    %cst_20 = arith.constant dense<0.000000e+00> : vector<8x256xf32>
    %45 = tpu.matmul %44, %35, %cst_20 {dimension_numbers = #tpu.dot_dimension_numbers<[1], [0], [0], [1], [0, 0, 1, 1], [], []>} : vector<8x8xf32>, vector<8x256xf32>, vector<8x256xf32> -> vector<8x256xf32>
    %46 = arith.addf %42, %45 : vector<8x256xf32>
    %c0_21 = arith.constant 0 : index
    %c0_22 = arith.constant 0 : index
    %47 = vector.load %arg3[%c0_21, %c0_22] : memref<8x1xf32, #tpu.memory_space<vmem>>, vector<8x1xf32>
    %48 = vector.broadcast %47 : vector<8x1xf32> to vector<8x256xf32>
    %49 = arith.addf %46, %48 : vector<8x256xf32>
    %cst_23 = arith.constant 0.000000e+00 : f32
    %50 = vector.broadcast %cst_23 : f32 to vector<8x256xf32>
    %51 = arith.maximumf %49, %50 : vector<8x256xf32>
    %52 = vector.extract_strided_slice %51 {offsets = [0, 0], sizes = [8, 128], strides = [1, 1]} : vector<8x256xf32> to vector<8x128xf32>
    %cst_24 = arith.constant dense<0.000000e+00> : vector<8xf32>
    %53 = vector.multi_reduction <add>, %52, %cst_24 [1] : vector<8x128xf32> to vector<8xf32>
    %54 = vector.shape_cast %53 : vector<8xf32> to vector<8x1xf32>
    %cst_25 = arith.constant 1.280000e+02 : f32
    %55 = vector.broadcast %cst_25 : f32 to vector<8x1xf32>
    %56 = arith.divf %54, %55 : vector<8x1xf32>
    %57 = vector.extract_strided_slice %51 {offsets = [0, 128], sizes = [8, 128], strides = [1, 1]} : vector<8x256xf32> to vector<8x128xf32>
    %cst_26 = arith.constant dense<0.000000e+00> : vector<8xf32>
    %58 = vector.multi_reduction <add>, %57, %cst_26 [1] : vector<8x128xf32> to vector<8xf32>
    %59 = vector.shape_cast %58 : vector<8xf32> to vector<8x1xf32>
    %cst_27 = arith.constant 1.280000e+02 : f32
    %60 = vector.broadcast %cst_27 : f32 to vector<8x1xf32>
    %61 = arith.divf %59, %60 : vector<8x1xf32>
    %62 = tpu.concatenate %56, %61 in 1 : vector<8x1xf32>, vector<8x1xf32> -> vector<8x2xf32>
    %c0_28 = arith.constant 0 : index
    %c0_29 = arith.constant 0 : index
    %63 = vector.load %arg4[%c0_28, %c0_29] : memref<4x8xf32, #tpu.memory_space<vmem>>, vector<4x8xf32>
    %cst_30 = arith.constant dense<0.000000e+00> : vector<4x2xf32>
    %64 = tpu.matmul %63, %62, %cst_30 {dimension_numbers = #tpu.dot_dimension_numbers<[1], [0], [0], [1], [0, 0, 1, 1], [], []>} : vector<4x8xf32>, vector<8x2xf32>, vector<4x2xf32> -> vector<4x2xf32>
    %c0_31 = arith.constant 0 : index
    %c0_32 = arith.constant 0 : index
    %65 = vector.load %arg5[%c0_31, %c0_32] : memref<4x1xf32, #tpu.memory_space<vmem>>, vector<4x1xf32>
    %66 = vector.broadcast %65 : vector<4x1xf32> to vector<4x2xf32>
    %67 = arith.addf %64, %66 : vector<4x2xf32>
    %cst_33 = arith.constant 0.000000e+00 : f32
    %68 = vector.broadcast %cst_33 : f32 to vector<4x2xf32>
    %69 = arith.maximumf %67, %68 : vector<4x2xf32>
    %c0_34 = arith.constant 0 : index
    %c0_35 = arith.constant 0 : index
    %70 = vector.load %arg6[%c0_34, %c0_35] : memref<8x4xf32, #tpu.memory_space<vmem>>, vector<8x4xf32>
    %cst_36 = arith.constant dense<0.000000e+00> : vector<8x2xf32>
    %71 = tpu.matmul %70, %69, %cst_36 {dimension_numbers = #tpu.dot_dimension_numbers<[1], [0], [0], [1], [0, 0, 1, 1], [], []>} : vector<8x4xf32>, vector<4x2xf32>, vector<8x2xf32> -> vector<8x2xf32>
    %c0_37 = arith.constant 0 : index
    %c0_38 = arith.constant 0 : index
    %72 = vector.load %arg7[%c0_37, %c0_38] : memref<8x1xf32, #tpu.memory_space<vmem>>, vector<8x1xf32>
    %73 = vector.broadcast %72 : vector<8x1xf32> to vector<8x2xf32>
    %74 = arith.addf %71, %73 : vector<8x2xf32>
    %75 = arith.negf %74 : vector<8x2xf32>
    %76 = math.exp %75 : vector<8x2xf32>
    %cst_39 = arith.constant 1.000000e+00 : f32
    %77 = vector.broadcast %cst_39 : f32 to vector<8x2xf32>
    %78 = arith.addf %77, %76 : vector<8x2xf32>
    %79 = arith.divf %77, %78 : vector<8x2xf32>
    %cst_40 = arith.constant 1.000000e+00 : f32
    %80 = vector.broadcast %cst_40 : f32 to vector<8x2xf32>
    %81 = arith.addf %79, %80 : vector<8x2xf32>
    %82 = vector.extract_strided_slice %81 {offsets = [0, 0], sizes = [8, 1], strides = [1, 1]} : vector<8x2xf32> to vector<8x1xf32>
    %83 = vector.broadcast %82 : vector<8x1xf32> to vector<8x128xf32>
    %84 = arith.mulf %1, %83 : vector<8x128xf32>
    %c0_41 = arith.constant 0 : index
    %c0_42 = arith.constant 0 : index
    %c0_43 = arith.constant 0 : index
    %85 = vector.load %arg8[%c0_41, %c0_42, %c0_43] : memref<2x8x128xf32, #tpu.memory_space<vmem>>, vector<1x8x128xf32>
    %86 = vector.shape_cast %85 : vector<1x8x128xf32> to vector<8x128xf32>
    %87 = vector.shape_cast %84 : vector<8x128xf32> to vector<1x8x128xf32>
    tpu.vector_store %arg8[%c0_41, %c0_42, %c0_43], %87 {strides = array<i32>} : memref<2x8x128xf32, #tpu.memory_space<vmem>>, vector<1x8x128xf32>,
    %88 = vector.extract_strided_slice %81 {offsets = [0, 1], sizes = [8, 1], strides = [1, 1]} : vector<8x2xf32> to vector<8x1xf32>
    %89 = vector.broadcast %88 : vector<8x1xf32> to vector<8x128xf32>
    %90 = arith.mulf %3, %89 : vector<8x128xf32>
    %c1_44 = arith.constant 1 : index
    %c0_45 = arith.constant 0 : index
    %c0_46 = arith.constant 0 : index
    %91 = vector.load %arg8[%c1_44, %c0_45, %c0_46] : memref<2x8x128xf32, #tpu.memory_space<vmem>>, vector<1x8x128xf32>
    %92 = vector.shape_cast %91 : vector<1x8x128xf32> to vector<8x128xf32>
    %93 = vector.shape_cast %90 : vector<8x128xf32> to vector<1x8x128xf32>
    tpu.vector_store %arg8[%c1_44, %c0_45, %c0_46], %93 {strides = array<i32>} : memref<2x8x128xf32, #tpu.memory_space<vmem>>, vector<1x8x128xf32>,
    return
  }
  func.func @transform_0(%arg0: i32) -> (i32, i32, i32) {
    %c0_i32 = arith.constant 0 : i32
    %c0_i32_0 = arith.constant 0 : i32
    %c0_i32_1 = arith.constant 0 : i32
    return %arg0, %c0_i32, %c0_i32_0 : i32, i32, i32
  }
  func.func @transform_1(%arg0: i32) -> (i32, i32, i32) {
    %c0_i32 = arith.constant 0 : i32
    %c0_i32_0 = arith.constant 0 : i32
    %c0_i32_1 = arith.constant 0 : i32
    %c0_i32_2 = arith.constant 0 : i32
    return %c0_i32, %c0_i32_0, %c0_i32_1 : i32, i32, i32
  }
  func.func @transform_2(%arg0: i32) -> (i32, i32) {
    %c0_i32 = arith.constant 0 : i32
    %c0_i32_0 = arith.constant 0 : i32
    %c0_i32_1 = arith.constant 0 : i32
    return %c0_i32, %c0_i32_0 : i32, i32
  }
  func.func @transform_3(%arg0: i32) -> (i32, i32) {
    %c0_i32 = arith.constant 0 : i32
    %c0_i32_0 = arith.constant 0 : i32
    %c0_i32_1 = arith.constant 0 : i32
    return %c0_i32, %c0_i32_0 : i32, i32
  }
  func.func @transform_4(%arg0: i32) -> (i32, i32) {
    %c0_i32 = arith.constant 0 : i32
    %c0_i32_0 = arith.constant 0 : i32
    %c0_i32_1 = arith.constant 0 : i32
    return %c0_i32, %c0_i32_0 : i32, i32
  }
  func.func @transform_5(%arg0: i32) -> (i32, i32) {
    %c0_i32 = arith.constant 0 : i32
    %c0_i32_0 = arith.constant 0 : i32
    %c0_i32_1 = arith.constant 0 : i32
    return %c0_i32, %c0_i32_0 : i32, i32
  }
  func.func @transform_6(%arg0: i32) -> (i32, i32) {
    %c0_i32 = arith.constant 0 : i32
    %c0_i32_0 = arith.constant 0 : i32
    %c0_i32_1 = arith.constant 0 : i32
    return %c0_i32, %c0_i32_0 : i32, i32
  }
  func.func @transform_7(%arg0: i32) -> (i32, i32, i32) {
    %c0_i32 = arith.constant 0 : i32
    %c0_i32_0 = arith.constant 0 : i32
    %c0_i32_1 = arith.constant 0 : i32
    return %arg0, %c0_i32, %c0_i32_0 : i32, i32, i32
  }
}

</mosaic_0001>

<llo_original>
// kernel: tpu_custom_call.1
$region0: #{tpu_custom_call.1}
  #allocation0 [shape = 'u32[]', space=smem, size = 0x4, offset = 0x4, fixed_abs, tag = 'smem constant byte address 0x4 - core index']
  #allocation1 [shape = 'u32[144,128]{1,0:T(1,128)}', space=vmem, size = 0x12000, scoped, tag = 'internal scratch']
  %s0 = inlined_call_operand.vmem [shape: f32[4,8,128], index: 0, kind: input, shape index: {}]
  %s1 = inlined_call_operand.hbm [shape: f32[3,8,8], index: 1, kind: input, shape index: {}]
  %s2 = inlined_call_operand.vmem [shape: f32[8,1], index: 2, kind: input, shape index: {}]
  %s3 = inlined_call_operand.vmem [shape: f32[4,8], index: 3, kind: input, shape index: {}]
  %s4 = inlined_call_operand.vmem [shape: f32[4,1], index: 4, kind: input, shape index: {}]
  %s5 = inlined_call_operand.vmem [shape: f32[8,4], index: 5, kind: input, shape index: {}]
  %s6 = inlined_call_operand.vmem [shape: f32[8,1], index: 6, kind: input, shape index: {}]
  %s7 = inlined_call_operand.hbm [shape: f32[4,8,128], index: 7, kind: output, shape index: {}]
  %s8 = sld [smem:[#allocation0]]
  $region65: #{tpu_custom_call.1} parent=0
    _
  %s10 = ssub.s32 1, %s8
  %s11 = scalar_select 0, %s10, %s8
  $region1: #{tpu_custom_call.1} parent=0
    #allocation2 [shape = 'u8[12288]{0}', space=vmem, size = 0x3000, scoped, tag = 'input window, operand 1, single buffered']
    #allocation3 [shape = 's32[2]{0}', space=sflag, size = 0x8, scoped, tag = 'scoped memory for tpu_custom_call.1']
    #allocation4 [shape = 's32[2]{0}', space=sflag, size = 0x8, scoped, tag = 'scoped memory for tpu_custom_call.1']
    #allocation5 [shape = 'u8[16384]{0}', space=vmem, size = 0x4000, scoped, tag = 'output window, operand 0']
    %12 = vsyncpa [#allocation3], 0
    %13 = vsyncpa [#allocation4], 0
    %s14 = scalar_lea.sflag [#allocation4], 1
    %15 = vsyncpa %s14, 0
    loop: start=0, step=1, limit=4
    $region2: #{tpu_custom_call.1} parent=1 // loop_pre_header
      _
    $region3: #{tpu_custom_call.1} parent=1 // loop_header
      %s17 = sphi 0, %s21
      %p18 = scmp.ge.s32.totalorder %s17, 4
      %s27 = sphi 0, %s29
      %s30 = sphi 0, %s27
      %s31 = sphi 0, %s30
      %s47 = sphi 0, %s31
      %s51 = sphi 0, %s51
      %s53 = sphi 0, %s51
      %s54 = sphi 0, %s53
      %s68 = sphi 0, %s54
      %s72 = sphi 0, %s72
      %s74 = sphi 0, %s72
      %s75 = sphi 0, %s74
      %s89 = sphi 0, %s75
      %s93 = sphi 0, %s93
      %s95 = sphi 0, %s93
      %s96 = sphi 0, %s95
      %s110 = sphi 0, %s96
      %s114 = sphi 0, %s114
      %s116 = sphi 0, %s114
      %s117 = sphi 0, %s116
      %s131 = sphi 0, %s117
      %s135 = sphi 0, %s135
      %s137 = sphi 0, %s135
      %s138 = sphi 0, %s137
      %s152 = sphi 0, %s138
      %s156 = sphi 0, %s156
      %s158 = sphi 0, %s156
      %s159 = sphi 0, %s158
      %s173 = sphi 0, %s159
      %s179 = sphi 0, %s181
      %s182 = sphi 0, %s179
      %s183 = sphi 0, %s182
      %s199 = sphi 0, %s183
    $region4: #{tpu_custom_call.1} parent=1 // loop_header_branch
      %20 = sbr.rel (%p18) target = $region8
    $region5: #{tpu_custom_call.1} parent=1 // loop_body
      %s22 = ssub.s32 %s17, 1
      %s23 = ssub.s32 %s17, 2
      %s24 = sadd.s32 %s17, 1
      %s25 = ssub.s32 %s17, %s24
      %p26 = scmp.eq.s32.totalorder %s25, 0
      %s28 = sadd.s32 %s27, 1
      %s29 = scalar_select %p26, %s27, %s28
      %p32 = pneg %p26
      %p33 = scmp.eq.s32.totalorder %s17, 1
      %p34 = por %p32, %p33
      %p35 = scmp.ne.s32.totalorder %s27, %s30
      %p36 = scmp.eq.s32.totalorder %s17, 0
      %p37 = por %p35, %p36
      %p38 = scmp.ne.s32.totalorder %s27, %s30
      %p39 = scmp.eq.s32.totalorder %s22, 1
      %p40 = por %p38, %p39
      %p41 = scmp.ne.s32.totalorder %s30, %s31
      %p42 = scmp.eq.s32.totalorder %s22, 0
      %p43 = por %p41, %p42
      %p44 = scmp.ne.s32.totalorder %s30, %s31
      %p45 = scmp.eq.s32.totalorder %s23, 1
      %p46 = por %p44, %p45
      %p48 = scmp.ne.s32.totalorder %s31, %s47
      %p49 = scmp.eq.s32.totalorder %s23, 0
      %p50 = por %p48, %p49
      %s52 = sadd.s32 %s51, 1
      %p55 = scmp.eq.s32.totalorder %s17, 1
      %p56 = scmp.ne.s32.totalorder %s51, %s53
      %p57 = scmp.eq.s32.totalorder %s17, 0
      %p58 = por %p56, %p57
      %p59 = scmp.ne.s32.totalorder %s51, %s53
      %p60 = scmp.eq.s32.totalorder %s22, 1
      %p61 = por %p59, %p60
      %p62 = scmp.ne.s32.totalorder %s53, %s54
      %p63 = scmp.eq.s32.totalorder %s22, 0
      %p64 = por %p62, %p63
      %p65 = scmp.ne.s32.totalorder %s53, %s54
      %p66 = scmp.eq.s32.totalorder %s23, 1
      %p67 = por %p65, %p66
      %p69 = scmp.ne.s32.totalorder %s54, %s68
      %p70 = scmp.eq.s32.totalorder %s23, 0
      %p71 = por %p69, %p70
      %s73 = sadd.s32 %s72, 1
      %p76 = scmp.eq.s32.totalorder %s17, 1
      %p77 = scmp.ne.s32.totalorder %s72, %s74
      %p78 = scmp.eq.s32.totalorder %s17, 0
      %p79 = por %p77, %p78
      %p80 = scmp.ne.s32.totalorder %s72, %s74
      %p81 = scmp.eq.s32.totalorder %s22, 1
      %p82 = por %p80, %p81
      %p83 = scmp.ne.s32.totalorder %s74, %s75
      %p84 = scmp.eq.s32.totalorder %s22, 0
      %p85 = por %p83, %p84
      %p86 = scmp.ne.s32.totalorder %s74, %s75
      %p87 = scmp.eq.s32.totalorder %s23, 1
      %p88 = por %p86, %p87
      %p90 = scmp.ne.s32.totalorder %s75, %s89
      %p91 = scmp.eq.s32.totalorder %s23, 0
      %p92 = por %p90, %p91
      %s94 = sadd.s32 %s93, 1
      %p97 = scmp.eq.s32.totalorder %s17, 1
      %p98 = scmp.ne.s32.totalorder %s93, %s95
      %p99 = scmp.eq.s32.totalorder %s17, 0
      %p100 = por %p98, %p99
      %p101 = scmp.ne.s32.totalorder %s93, %s95
      %p102 = scmp.eq.s32.totalorder %s22, 1
      %p103 = por %p101, %p102
      %p104 = scmp.ne.s32.totalorder %s95, %s96
      %p105 = scmp.eq.s32.totalorder %s22, 0
      %p106 = por %p104, %p105
      %p107 = scmp.ne.s32.totalorder %s95, %s96
      %p108 = scmp.eq.s32.totalorder %s23, 1
      %p109 = por %p107, %p108
      %p111 = scmp.ne.s32.totalorder %s96, %s110
      %p112 = scmp.eq.s32.totalorder %s23, 0
      %p113 = por %p111, %p112
      %s115 = sadd.s32 %s114, 1
      %p118 = scmp.eq.s32.totalorder %s17, 1
      %p119 = scmp.ne.s32.totalorder %s114, %s116
      %p120 = scmp.eq.s32.totalorder %s17, 0
      %p121 = por %p119, %p120
      %p122 = scmp.ne.s32.totalorder %s114, %s116
      %p123 = scmp.eq.s32.totalorder %s22, 1
      %p124 = por %p122, %p123
      %p125 = scmp.ne.s32.totalorder %s116, %s117
      %p126 = scmp.eq.s32.totalorder %s22, 0
      %p127 = por %p125, %p126
      %p128 = scmp.ne.s32.totalorder %s116, %s117
      %p129 = scmp.eq.s32.totalorder %s23, 1
      %p130 = por %p128, %p129
      %p132 = scmp.ne.s32.totalorder %s117, %s131
      %p133 = scmp.eq.s32.totalorder %s23, 0
      %p134 = por %p132, %p133
      %s136 = sadd.s32 %s135, 1
      %p139 = scmp.eq.s32.totalorder %s17, 1
      %p140 = scmp.ne.s32.totalorder %s135, %s137
      %p141 = scmp.eq.s32.totalorder %s17, 0
      %p142 = por %p140, %p141
      %p143 = scmp.ne.s32.totalorder %s135, %s137
      %p144 = scmp.eq.s32.totalorder %s22, 1
      %p145 = por %p143, %p144
      %p146 = scmp.ne.s32.totalorder %s137, %s138
      %p147 = scmp.eq.s32.totalorder %s22, 0
      %p148 = por %p146, %p147
      %p149 = scmp.ne.s32.totalorder %s137, %s138
      %p150 = scmp.eq.s32.totalorder %s23, 1
      %p151 = por %p149, %p150
      %p153 = scmp.ne.s32.totalorder %s138, %s152
      %p154 = scmp.eq.s32.totalorder %s23, 0
      %p155 = por %p153, %p154
      %s157 = sadd.s32 %s156, 1
      %p160 = scmp.eq.s32.totalorder %s17, 1
      %p161 = scmp.ne.s32.totalorder %s156, %s158
      %p162 = scmp.eq.s32.totalorder %s17, 0
      %p163 = por %p161, %p162
      %p164 = scmp.ne.s32.totalorder %s156, %s158
      %p165 = scmp.eq.s32.totalorder %s22, 1
      %p166 = por %p164, %p165
      %p167 = scmp.ne.s32.totalorder %s158, %s159
      %p168 = scmp.eq.s32.totalorder %s22, 0
      %p169 = por %p167, %p168
      %p170 = scmp.ne.s32.totalorder %s158, %s159
      %p171 = scmp.eq.s32.totalorder %s23, 1
      %p172 = por %p170, %p171
      %p174 = scmp.ne.s32.totalorder %s159, %s173
      %p175 = scmp.eq.s32.totalorder %s23, 0
      %p176 = por %p174, %p175
      %s177 = ssub.s32 %s17, %s24
      %p178 = scmp.eq.s32.totalorder %s177, 0
      %s180 = sadd.s32 %s179, 1
      %s181 = scalar_select %p178, %s179, %s180
      %p184 = pneg %p178
      %p185 = scmp.eq.s32.totalorder %s17, 1
      %p186 = por %p184, %p185
      %p187 = scmp.ne.s32.totalorder %s179, %s182
      %p188 = scmp.eq.s32.totalorder %s17, 0
      %p189 = por %p187, %p188
      %p190 = scmp.ne.s32.totalorder %s179, %s182
      %p191 = scmp.eq.s32.totalorder %s22, 1
      %p192 = por %p190, %p191
      %p193 = scmp.ne.s32.totalorder %s182, %s183
      %p194 = scmp.eq.s32.totalorder %s22, 0
      %p195 = por %p193, %p194
      %p196 = scmp.ne.s32.totalorder %s182, %s183
      %p197 = scmp.eq.s32.totalorder %s23, 1
      %p198 = por %p196, %p197
      %p200 = scmp.ne.s32.totalorder %s183, %s199
      %p201 = scmp.eq.s32.totalorder %s23, 0
      %p202 = por %p200, %p201
      %p203 = scmp.le.s32.totalorder 1, %s17
      %p204 = scmp.lt.s32.totalorder %s17, 3
      %p205 = pnand %p203, %p204
      %p206 = pneg %p205
      // Predicated region
      $region9: #{tpu_custom_call.1} parent=5 // pred_check
        _
      $region10: #{tpu_custom_call.1} parent=5 // pred_check_branch
        %208 = sbr.rel (%p205) target = $region12
      $region11: #{tpu_custom_call.1} parent=5 // pred_region
        %s209 = ssub.s32 %s17, 1
        // Predicated region
        $region13: #{tpu_custom_call.1} parent=11 // pred_check
          %p210 = pneg %p64
        $region14: #{tpu_custom_call.1} parent=11 // pred_check_branch
          %212 = sbr.rel (%p210) target = $region16
        $region15: #{tpu_custom_call.1} parent=11 // pred_region
          %s214 = ssub.s32 384, 384
          %215 = vsyncadd [#allocation3], %s214
          %s216 = sshll.u32 [#allocation2], 4
          %s217 = int_to_ptr.vmem [resolvable:$true] %s216
          %222 = dma.hbm_to_vmem [thread:$0]  %s1, 384, %s217, [#allocation3], 128, 128, 8
        $region16: #{tpu_custom_call.1} parent=11 // pred_fallthru
          _
        // Predicated region
        $region17: #{tpu_custom_call.1} parent=11 // pred_check
          %p223 = pneg %p85
        $region18: #{tpu_custom_call.1} parent=11 // pred_check_branch
          %225 = sbr.rel (%p223) target = $region20
        $region19: #{tpu_custom_call.1} parent=11 // pred_region
          _
        $region20: #{tpu_custom_call.1} parent=11 // pred_fallthru
          _
        // Predicated region
        $region21: #{tpu_custom_call.1} parent=11 // pred_check
          %p226 = pneg %p106
        $region22: #{tpu_custom_call.1} parent=11 // pred_check_branch
          %228 = sbr.rel (%p226) target = $region24
        $region23: #{tpu_custom_call.1} parent=11 // pred_region
          _
        $region24: #{tpu_custom_call.1} parent=11 // pred_fallthru
          _
        // Predicated region
        $region25: #{tpu_custom_call.1} parent=11 // pred_check
          %p229 = pneg %p127
        $region26: #{tpu_custom_call.1} parent=11 // pred_check_branch
          %231 = sbr.rel (%p229) target = $region28
        $region27: #{tpu_custom_call.1} parent=11 // pred_region
          _
        $region28: #{tpu_custom_call.1} parent=11 // pred_fallthru
          _
        // Predicated region
        $region29: #{tpu_custom_call.1} parent=11 // pred_check
          %p232 = pneg %p148
        $region30: #{tpu_custom_call.1} parent=11 // pred_check_branch
          %234 = sbr.rel (%p232) target = $region32
        $region31: #{tpu_custom_call.1} parent=11 // pred_region
          _
        $region32: #{tpu_custom_call.1} parent=11 // pred_fallthru
          _
        // Predicated region
        $region33: #{tpu_custom_call.1} parent=11 // pred_check
          %p235 = pneg %p169
        $region34: #{tpu_custom_call.1} parent=11 // pred_check_branch
          %237 = sbr.rel (%p235) target = $region36
        $region35: #{tpu_custom_call.1} parent=11 // pred_region
          _
        $region36: #{tpu_custom_call.1} parent=11 // pred_fallthru
          _
      $region12: #{tpu_custom_call.1} parent=5 // pred_fallthru
        _
      %p238 = scmp.lt.s32.totalorder %s17, 2
      // Predicated region
      $region37: #{tpu_custom_call.1} parent=5 // pred_check
        %p239 = pneg %p238
      $region38: #{tpu_custom_call.1} parent=5 // pred_check_branch
        %241 = sbr.rel (%p239) target = $region40
      $region39: #{tpu_custom_call.1} parent=5 // pred_region
        // Predicated region
        $region41: #{tpu_custom_call.1} parent=39 // pred_check
          %p242 = pneg %p37
        $region42: #{tpu_custom_call.1} parent=39 // pred_check_branch
          %244 = sbr.rel (%p242) target = $region44
        $region43: #{tpu_custom_call.1} parent=39 // pred_region
          %s245 = smul.u32 2, %s17
          %p246 = scmp.lt.s32.totalorder %s245, 3
          %s247 = scalar_select %p246, %s245, 3
          %s248 = smul.addr %s247, 8
          %s249 = scalar_lea.vmem %s0, %s248
          %s250 = smul.u32 2, %s17
        $region44: #{tpu_custom_call.1} parent=39 // pred_fallthru
          _
      $region40: #{tpu_custom_call.1} parent=5 // pred_fallthru
        _
      %p251 = scmp.le.s32.totalorder 1, %s17
      %p252 = scmp.lt.s32.totalorder %s17, 3
      %p253 = pnand %p251, %p252
      %p254 = pneg %p253
      // Predicated region
      $region45: #{tpu_custom_call.1} parent=5 // pred_check
        _
      $region46: #{tpu_custom_call.1} parent=5 // pred_check_branch
        %256 = sbr.rel (%p253) target = $region48
      $region47: #{tpu_custom_call.1} parent=5 // pred_region
        %s257 = ssub.s32 %s17, 1
        // Predicated region
        $region49: #{tpu_custom_call.1} parent=47 // pred_check
          %p258 = pneg %p64
        $region50: #{tpu_custom_call.1} parent=47 // pred_check_branch
          %260 = sbr.rel (%p258) target = $region52
        $region51: #{tpu_custom_call.1} parent=47 // pred_region
          %261 = dma.done [#allocation3], 384
        $region52: #{tpu_custom_call.1} parent=47 // pred_fallthru
          _
        %s262 = smul.u32 2, %s22
        %p263 = scmp.lt.s32.totalorder %s262, 3
        %s264 = scalar_select %p263, %s262, 3
        %s265 = smul.addr %s264, 8
        %s266 = scalar_lea.vmem %s0, %s265
        %p267 = pneg %p43
        %p268 = pneg %p40
        %p269 = pneg %p64
        %p270 = pneg %p61
        %p271 = pneg %p85
        %p272 = pneg %p82
        %p273 = pneg %p106
        %p274 = pneg %p103
        %p275 = pneg %p127
        %p276 = pneg %p124
        %p277 = pneg %p148
        %p278 = pneg %p145
        %p279 = pneg %p169
        %p280 = pneg %p166
        %p281 = pneg %p195
        %p282 = pneg %p192
        %s283 = sand.u32 %s182, 1
        %s284 = scalar_lea.sflag [#allocation4], %s283
        %s285 = sand.u32 %s182, 1
        %s286 = smul.addr %s285, 16
        %s287 = scalar_lea.vmem [#allocation5], %s286
        %s288 = smul.u32 2, %s22
        %p289 = scmp.lt.s32.totalorder %s288, 3
        %s290 = scalar_select %p289, %s288, 3
        %s291 = smul.addr %s290, 8
        %s292 = scalar_lea.vmem %s0, %s291
        %s293 = smul.u32 2, %s22
        %s294 = smul.u32 2, %s22
        %v295 = vld [vmem:[%s292] sm:$0xff]
        %s296 = scalar_lea.vmem %s292, 8
        %v297 = vld [vmem:[%s296] sm:$0xff]
        %v298 = vlaneseq
        %v299 = vand.u32 %v298, 127
        %v300 = vadd.s32 %v299, 128
        %vm301 = vcmp.lt.s32.totalorder %v299, 0
        %v302 = vsub.s32 0, %v299
        %v303 = vsel %vm301, %v302, %v299
        %v304 = vshrl.u32 %v303, 7
        %v305 = vand.u32 %v303, 127
        %v306 = vsub.s32 0, %v305
        %v307 = vsel %vm301, %v306, %v305
        %vm308 = vcmp.lt.s32.totalorder %v300, 0
        %v309 = vsub.s32 0, %v300
        %v310 = vsel %vm308, %v309, %v300
        %v311 = vshrl.u32 %v310, 7
        %v312 = vand.u32 %v310, 127
        %v313 = vsub.s32 0, %v312
        %v314 = vsel %vm308, %v313, %v312
        %vm315 = vcmp.ne.s32.totalorder %v307, 0
        %vm316 = vcmp.ne.s32.totalorder %v314, 0
        %vm317 = vcmp.lt.s32.totalorder %v307, 0
        %vm318 = vcmp.lt.s32.totalorder %v314, 0
        %vm319 = vmand %vm317, %vm315
        %vm320 = vmand %vm318, %vm316
        %v321 = vadd.s32 %v307, 128
        %v322 = vadd.s32 %v314, 128
        %v323 = vsel %vm319, %v321, %v307
        %v324 = vsel %vm320, %v322, %v314
        %vm325 = vcmp.eq.s32.totalorder %v323, 0
        %vm326 = vcmp.eq.s32.totalorder %v324, 0
        %327 = vrot.lane.b32.xlu0 %v295, 1
        %v328 = vpop.permute.xlu0 %327
        %329 = vrot.lane.b32.xlu0 %v297, 1
        %v330 = vpop.permute.xlu0 %329
        %vm331 = vcmp.lt.s32.totalorder %v299, 1
        %v332 = vsel %vm331, %v328, %v330
        %v333 = vsel %vm331, %v330, %v328
        %v334 = vsel %vm325, 1, 0
        %v335 = vsel %vm326, 1, 0
        %vm336 = vcmp.eq.s32.totalorder %v334, 1
        %vm337 = vcmp.eq.s32.totalorder %v335, 1
        %v338 = vsel %vm336, 0.0, %v333
        %v339 = vsel %vm337, 0.0, %v332
        %vm340 = vcmp.eq.s32.totalorder %v323, 127
        %vm341 = vcmp.eq.s32.totalorder %v324, 127
        %342 = vrot.lane.b32.xlu0 %v295, 127
        %v343 = vpop.permute.xlu0 %342
        %344 = vrot.lane.b32.xlu0 %v297, 127
        %v345 = vpop.permute.xlu0 %344
        %vm346 = vcmp.lt.s32.totalorder %v299, 127
        %v347 = vsel %vm346, %v343, %v345
        %v348 = vsel %vm346, %v345, %v343
        %v349 = vsel %vm340, 1, 0
        %v350 = vsel %vm341, 1, 0
        %vm351 = vcmp.eq.s32.totalorder %v349, 1
        %vm352 = vcmp.eq.s32.totalorder %v350, 1
        %v353 = vsel %vm351, 0.0, %v347
        %v354 = vsel %vm352, 0.0, %v348
        %v355 = vld [vmem:[#allocation2] sm:$0xff]
        %s356 = scalar_lea.vmem [#allocation2], 8
        %v357 = vld [vmem:[%s356] sm:$0xff]
        %vm358 = vcmask 64512
        %v360 = vsel %vm358, %v357, 0
        %362 = vmatprep.subr.mxu0 0.0
        %363 = vmatpush1.msra.mxu0 0.0
        %364 = vmatprep.subr.mxu0 0.0
        %365 = vmatpush1.msra.mxu0 0.0
        %366 = vmatprep.subr.mxu0 0.0
        %367 = vmatpush1.msra.mxu0 0.0
        %368 = vmatprep.subr.mxu0 0.0
        %369 = vmatpush1.msra.mxu0 0.0
        %370 = vmatprep.subr.mxu0 0.0
        %371 = vmatpush1.msra.mxu0 0.0
        %372 = vmatprep.subr.mxu0 0.0
        %373 = vmatpush1.msra.mxu0 0.0
        %374 = vmatprep.subr.mxu0 0.0
        %375 = vmatpush1.msra.mxu0 0.0
        %376 = vmatprep.subr.mxu0 0.0
        %377 = vmatpush1.msra.mxu0 0.0
        %378 = vmatprep.subr.mxu0 0.0
        %379 = vmatpush1.msra.mxu0 0.0
        %380 = vmatprep.subr.mxu0 0.0
        %381 = vmatpush1.msra.mxu0 0.0
        %382 = vmatprep.subr.mxu0 0.0
        %383 = vmatpush1.msra.mxu0 0.0
        %384 = vmatprep.subr.mxu0 0.0
        %385 = vmatpush1.msra.mxu0 0.0
        %386 = vmatprep.subr.mxu0 0.0
        %387 = vmatpush1.msra.mxu0 0.0
        %388 = vmatprep.subr.mxu0 0.0
        %389 = vmatpush1.msra.mxu0 0.0
        %390 = vmatprep.subr.mxu0 0.0
        %391 = vmatpush1.msra.mxu0 0.0
        %392 = vmatprep.subr.mxu0 %v297
        %393 = vmatpush1.msra.mxu0 %v295
        %394 = vmatprep.subr.mxu0 0.0
        %395 = vmatpush2.msra.mxu0 0.0
        %396 = vmatprep.subr.mxu0 0.0
        %397 = vmatpush2.msra.mxu0 0.0
        %398 = vmatprep.subr.mxu0 0.0
        %399 = vmatpush2.msra.mxu0 0.0
        %400 = vmatprep.subr.mxu0 0.0
        %401 = vmatpush2.msra.mxu0 0.0
        %402 = vmatprep.subr.mxu0 0.0
        %403 = vmatpush2.msra.mxu0 0.0
        %404 = vmatprep.subr.mxu0 0.0
        %405 = vmatpush2.msra.mxu0 0.0
        %406 = vmatprep.subr.mxu0 0.0
        %407 = vmatpush2.msra.mxu0 0.0
        %408 = vmatprep.subr.mxu0 0.0
        %409 = vmatpush2.msra.mxu0 0.0
        %410 = vmatprep.subr.mxu0 0.0
        %411 = vmatpush2.msra.mxu0 0.0
        %412 = vmatprep.subr.mxu0 0.0
        %413 = vmatpush2.msra.mxu0 0.0
        %414 = vmatprep.subr.mxu0 0.0
        %415 = vmatpush2.msra.mxu0 0.0
        %416 = vmatprep.subr.mxu0 0.0
        %417 = vmatpush2.msra.mxu0 0.0
        %418 = vmatprep.subr.mxu0 0.0
        %419 = vmatpush2.msra.mxu0 0.0
        %420 = vmatprep.subr.mxu0 0.0
        %421 = vmatpush2.msra.mxu0 0.0
        %422 = vmatprep.subr.mxu0 0.0
        %423 = vmatpush2.msra.mxu0 0.0
        %424 = vmatprep.subr.mxu0 0.0
        %425 = vmatpush2.msra.mxu0 0.0
        %426 = vmatprep.mubr.f32.mxu0 0.0
        %427 = vmatmul.mubr.f32.gmra.mxu0 %v360
        %v428 = vpop.f32.mrf.mxu0
        %v429 = vadd.f32 0.0, %v428
        %v430 = vpop.f32.mrf.mxu0
        %v431 = vadd.f32 0.0, %v430
        %432 = vdwg.mxu0
        %v434 = vsel %vm358, %v355, 0
        %436 = vmatprep.subr.mxu0 0.0
        %437 = vmatpush1.msra.mxu0 0.0
        %438 = vmatprep.subr.mxu0 0.0
        %439 = vmatpush1.msra.mxu0 0.0
        %440 = vmatprep.subr.mxu0 0.0
        %441 = vmatpush1.msra.mxu0 0.0
        %442 = vmatprep.subr.mxu0 0.0
        %443 = vmatpush1.msra.mxu0 0.0
        %444 = vmatprep.subr.mxu0 0.0
        %445 = vmatpush1.msra.mxu0 0.0
        %446 = vmatprep.subr.mxu0 0.0
        %447 = vmatpush1.msra.mxu0 0.0
        %448 = vmatprep.subr.mxu0 0.0
        %449 = vmatpush1.msra.mxu0 0.0
        %450 = vmatprep.subr.mxu0 0.0
        %451 = vmatpush1.msra.mxu0 0.0
        %452 = vmatprep.subr.mxu0 0.0
        %453 = vmatpush1.msra.mxu0 0.0
        %454 = vmatprep.subr.mxu0 0.0
        %455 = vmatpush1.msra.mxu0 0.0
        %456 = vmatprep.subr.mxu0 0.0
        %457 = vmatpush1.msra.mxu0 0.0
        %458 = vmatprep.subr.mxu0 0.0
        %459 = vmatpush1.msra.mxu0 0.0
        %460 = vmatprep.subr.mxu0 0.0
        %461 = vmatpush1.msra.mxu0 0.0
        %462 = vmatprep.subr.mxu0 0.0
        %463 = vmatpush1.msra.mxu0 0.0
        %464 = vmatprep.subr.mxu0 0.0
        %465 = vmatpush1.msra.mxu0 0.0
        %466 = vmatprep.subr.mxu0 %v339
        %467 = vmatpush1.msra.mxu0 %v338
        %468 = vmatprep.subr.mxu0 0.0
        %469 = vmatpush2.msra.mxu0 0.0
        %470 = vmatprep.subr.mxu0 0.0
        %471 = vmatpush2.msra.mxu0 0.0
        %472 = vmatprep.subr.mxu0 0.0
        %473 = vmatpush2.msra.mxu0 0.0
        %474 = vmatprep.subr.mxu0 0.0
        %475 = vmatpush2.msra.mxu0 0.0
        %476 = vmatprep.subr.mxu0 0.0
        %477 = vmatpush2.msra.mxu0 0.0
        %478 = vmatprep.subr.mxu0 0.0
        %479 = vmatpush2.msra.mxu0 0.0
        %480 = vmatprep.subr.mxu0 0.0
        %481 = vmatpush2.msra.mxu0 0.0
        %482 = vmatprep.subr.mxu0 0.0
        %483 = vmatpush2.msra.mxu0 0.0
        %484 = vmatprep.subr.mxu0 0.0
        %485 = vmatpush2.msra.mxu0 0.0
        %486 = vmatprep.subr.mxu0 0.0
        %487 = vmatpush2.msra.mxu0 0.0
        %488 = vmatprep.subr.mxu0 0.0
        %489 = vmatpush2.msra.mxu0 0.0
        %490 = vmatprep.subr.mxu0 0.0
        %491 = vmatpush2.msra.mxu0 0.0
        %492 = vmatprep.subr.mxu0 0.0
        %493 = vmatpush2.msra.mxu0 0.0
        %494 = vmatprep.subr.mxu0 0.0
        %495 = vmatpush2.msra.mxu0 0.0
        %496 = vmatprep.subr.mxu0 0.0
        %497 = vmatpush2.msra.mxu0 0.0
        %498 = vmatprep.subr.mxu0 0.0
        %499 = vmatpush2.msra.mxu0 0.0
        %500 = vmatprep.mubr.f32.mxu0 0.0
        %501 = vmatmul.mubr.f32.gmra.mxu0 %v434
        %v502 = vpop.f32.mrf.mxu0
        %v503 = vadd.f32 %v429, %v502
        %v504 = vpop.f32.mrf.mxu0
        %v505 = vadd.f32 %v431, %v504
        %506 = vdwg.mxu0
        %s507 = scalar_lea.vmem [#allocation2], 16
        %v508 = vld [vmem:[%s507] sm:$0xff]
        %v510 = vsel %vm358, %v508, 0
        %512 = vmatprep.subr.mxu0 0.0
        %513 = vmatpush1.msra.mxu0 0.0
        %514 = vmatprep.subr.mxu0 0.0
        %515 = vmatpush1.msra.mxu0 0.0
        %516 = vmatprep.subr.mxu0 0.0
        %517 = vmatpush1.msra.mxu0 0.0
        %518 = vmatprep.subr.mxu0 0.0
        %519 = vmatpush1.msra.mxu0 0.0
        %520 = vmatprep.subr.mxu0 0.0
        %521 = vmatpush1.msra.mxu0 0.0
        %522 = vmatprep.subr.mxu0 0.0
        %523 = vmatpush1.msra.mxu0 0.0
        %524 = vmatprep.subr.mxu0 0.0
        %525 = vmatpush1.msra.mxu0 0.0
        %526 = vmatprep.subr.mxu0 0.0
        %527 = vmatpush1.msra.mxu0 0.0
        %528 = vmatprep.subr.mxu0 0.0
        %529 = vmatpush1.msra.mxu0 0.0
        %530 = vmatprep.subr.mxu0 0.0
        %531 = vmatpush1.msra.mxu0 0.0
        %532 = vmatprep.subr.mxu0 0.0
        %533 = vmatpush1.msra.mxu0 0.0
        %534 = vmatprep.subr.mxu0 0.0
        %535 = vmatpush1.msra.mxu0 0.0
        %536 = vmatprep.subr.mxu0 0.0
        %537 = vmatpush1.msra.mxu0 0.0
        %538 = vmatprep.subr.mxu0 0.0
        %539 = vmatpush1.msra.mxu0 0.0
        %540 = vmatprep.subr.mxu0 0.0
        %541 = vmatpush1.msra.mxu0 0.0
        %542 = vmatprep.subr.mxu0 %v354
        %543 = vmatpush1.msra.mxu0 %v353
        %544 = vmatprep.subr.mxu0 0.0
        %545 = vmatpush2.msra.mxu0 0.0
        %546 = vmatprep.subr.mxu0 0.0
        %547 = vmatpush2.msra.mxu0 0.0
        %548 = vmatprep.subr.mxu0 0.0
        %549 = vmatpush2.msra.mxu0 0.0
        %550 = vmatprep.subr.mxu0 0.0
        %551 = vmatpush2.msra.mxu0 0.0
        %552 = vmatprep.subr.mxu0 0.0
        %553 = vmatpush2.msra.mxu0 0.0
        %554 = vmatprep.subr.mxu0 0.0
        %555 = vmatpush2.msra.mxu0 0.0
        %556 = vmatprep.subr.mxu0 0.0
        %557 = vmatpush2.msra.mxu0 0.0
        %558 = vmatprep.subr.mxu0 0.0
        %559 = vmatpush2.msra.mxu0 0.0
        %560 = vmatprep.subr.mxu0 0.0
        %561 = vmatpush2.msra.mxu0 0.0
        %562 = vmatprep.subr.mxu0 0.0
        %563 = vmatpush2.msra.mxu0 0.0
        %564 = vmatprep.subr.mxu0 0.0
        %565 = vmatpush2.msra.mxu0 0.0
        %566 = vmatprep.subr.mxu0 0.0
        %567 = vmatpush2.msra.mxu0 0.0
        %568 = vmatprep.subr.mxu0 0.0
        %569 = vmatpush2.msra.mxu0 0.0
        %570 = vmatprep.subr.mxu0 0.0
        %571 = vmatpush2.msra.mxu0 0.0
        %572 = vmatprep.subr.mxu0 0.0
        %573 = vmatpush2.msra.mxu0 0.0
        %574 = vmatprep.subr.mxu0 0.0
        %575 = vmatpush2.msra.mxu0 0.0
        %576 = vmatprep.mubr.f32.mxu0 0.0
        %577 = vmatmul.mubr.f32.gmra.mxu0 %v510
        %v578 = vpop.f32.mrf.mxu0
        %v579 = vadd.f32 0.0, %v578
        %v580 = vpop.f32.mrf.mxu0
        %v581 = vadd.f32 0.0, %v580
        %582 = vdwg.mxu0
        %v583 = vadd.f32 %v503, %v579
        %v584 = vadd.f32 %v505, %v581
        %v585 = vld [vmem:[%s2] sm:$0xff]
        %587 = vset.pattern.permute.xlu0 0
        %588 = vperm.xlu0 %587, %v585
        %v589 = vpop.permute.xlu0 %588
        %v591 = vadd.f32 %v583, %v589
        %v592 = vadd.f32 %v584, %v589
        %v593 = vmax.f32 %v591, 0.0
        %v594 = vmax.f32 %v592, 0.0
        %595 = vadd.xlane.f32.xlu0 %v593
        %v596 = vpop.xlane.xlu0 %595
        %v597 = vrcp.pop 128.0
        %v598 = vmul.f32 %v596, %v597
        %599 = vadd.xlane.f32.xlu0 %v594
        %v600 = vpop.xlane.xlu0 %599
        %v601 = vmul.f32 %v600, %v597
        %vm602 = vcmask 7168
        %v603 = vsel %vm602, %v598, %v601
        %v604 = vld [vmem:[%s3] sm:$0xf]
        %v605 = vld [vmem:[%s4] sm:$0xf]
        %607 = vset.pattern.permute.xlu0 0
        %608 = vperm.xlu0 %607, %v605
        %v609 = vpop.permute.xlu0 %608
        %v612 = vsel %vm358, %v604, 0
        %614 = vmatprep.subr.mxu0 0.0
        %615 = vmatpush1.msra.mxu0 0.0
        %616 = vmatprep.subr.mxu0 0.0
        %617 = vmatpush1.msra.mxu0 0.0
        %618 = vmatprep.subr.mxu0 0.0
        %619 = vmatpush1.msra.mxu0 0.0
        %620 = vmatprep.subr.mxu0 0.0
        %621 = vmatpush1.msra.mxu0 0.0
        %622 = vmatprep.subr.mxu0 0.0
        %623 = vmatpush1.msra.mxu0 0.0
        %624 = vmatprep.subr.mxu0 0.0
        %625 = vmatpush1.msra.mxu0 0.0
        %626 = vmatprep.subr.mxu0 0.0
        %627 = vmatpush1.msra.mxu0 0.0
        %628 = vmatprep.subr.mxu0 0.0
        %629 = vmatpush1.msra.mxu0 0.0
        %630 = vmatprep.subr.mxu0 0.0
        %631 = vmatpush1.msra.mxu0 0.0
        %632 = vmatprep.subr.mxu0 0.0
        %633 = vmatpush1.msra.mxu0 0.0
        %634 = vmatprep.subr.mxu0 0.0
        %635 = vmatpush1.msra.mxu0 0.0
        %636 = vmatprep.subr.mxu0 0.0
        %637 = vmatpush1.msra.mxu0 0.0
        %638 = vmatprep.subr.mxu0 0.0
        %639 = vmatpush1.msra.mxu0 0.0
        %640 = vmatprep.subr.mxu0 0.0
        %641 = vmatpush1.msra.mxu0 0.0
        %642 = vmatprep.subr.mxu0 0.0
        %643 = vmatpush1.msra.mxu0 0.0
        %644 = vmatprep.subr.mxu0 0.0
        %645 = vmatpush1.msra.mxu0 %v603
        %646 = vmatprep.subr.mxu0 0.0
        %647 = vmatpush2.msra.mxu0 0.0
        %648 = vmatprep.subr.mxu0 0.0
        %649 = vmatpush2.msra.mxu0 0.0
        %650 = vmatprep.subr.mxu0 0.0
        %651 = vmatpush2.msra.mxu0 0.0
        %652 = vmatprep.subr.mxu0 0.0
        %653 = vmatpush2.msra.mxu0 0.0
        %654 = vmatprep.subr.mxu0 0.0
        %655 = vmatpush2.msra.mxu0 0.0
        %656 = vmatprep.subr.mxu0 0.0
        %657 = vmatpush2.msra.mxu0 0.0
        %658 = vmatprep.subr.mxu0 0.0
        %659 = vmatpush2.msra.mxu0 0.0
        %660 = vmatprep.subr.mxu0 0.0
        %661 = vmatpush2.msra.mxu0 0.0
        %662 = vmatprep.subr.mxu0 0.0
        %663 = vmatpush2.msra.mxu0 0.0
        %664 = vmatprep.subr.mxu0 0.0
        %665 = vmatpush2.msra.mxu0 0.0
        %666 = vmatprep.subr.mxu0 0.0
        %667 = vmatpush2.msra.mxu0 0.0
        %668 = vmatprep.subr.mxu0 0.0
        %669 = vmatpush2.msra.mxu0 0.0
        %670 = vmatprep.subr.mxu0 0.0
        %671 = vmatpush2.msra.mxu0 0.0
        %672 = vmatprep.subr.mxu0 0.0
        %673 = vmatpush2.msra.mxu0 0.0
        %674 = vmatprep.subr.mxu0 0.0
        %675 = vmatpush2.msra.mxu0 0.0
        %676 = vmatprep.subr.mxu0 0.0
        %677 = vmatpush2.msra.mxu0 0.0
        %678 = vmatprep.mubr.f32.mxu0 0.0
        %679 = vmatmul.mubr.f32.gmra.mxu0 %v612
        %v680 = vpop.f32.mrf.mxu0
        %v681 = vadd.f32 %v609, %v680
        %v682 = vpop.f32.mrf.mxu0
        %683 = vdwg.mxu0
        %v684 = vmax.f32 %v681, 0.0
        %v685 = vld [vmem:[%s5] sm:$0xff]
        %v686 = vld [vmem:[%s6] sm:$0xff]
        %688 = vset.pattern.permute.xlu0 0
        %689 = vperm.xlu0 %688, %v686
        %v690 = vpop.permute.xlu0 %689
        %vm692 = vcmask 31744
        %v694 = vsel %vm692, %v685, 0
        %vm696 = vcmask 1043456
        %v698 = vsel %vm696, %v684, 0
        %700 = vmatprep.subr.mxu0 0.0
        %701 = vmatpush1.msra.mxu0 0.0
        %702 = vmatprep.subr.mxu0 0.0
        %703 = vmatpush1.msra.mxu0 0.0
        %704 = vmatprep.subr.mxu0 0.0
        %705 = vmatpush1.msra.mxu0 0.0
        %706 = vmatprep.subr.mxu0 0.0
        %707 = vmatpush1.msra.mxu0 0.0
        %708 = vmatprep.subr.mxu0 0.0
        %709 = vmatpush1.msra.mxu0 0.0
        %710 = vmatprep.subr.mxu0 0.0
        %711 = vmatpush1.msra.mxu0 0.0
        %712 = vmatprep.subr.mxu0 0.0
        %713 = vmatpush1.msra.mxu0 0.0
        %714 = vmatprep.subr.mxu0 0.0
        %715 = vmatpush1.msra.mxu0 0.0
        %716 = vmatprep.subr.mxu0 0.0
        %717 = vmatpush1.msra.mxu0 0.0
        %718 = vmatprep.subr.mxu0 0.0
        %719 = vmatpush1.msra.mxu0 0.0
        %720 = vmatprep.subr.mxu0 0.0
        %721 = vmatpush1.msra.mxu0 0.0
        %722 = vmatprep.subr.mxu0 0.0
        %723 = vmatpush1.msra.mxu0 0.0
        %724 = vmatprep.subr.mxu0 0.0
        %725 = vmatpush1.msra.mxu0 0.0
        %726 = vmatprep.subr.mxu0 0.0
        %727 = vmatpush1.msra.mxu0 0.0
        %728 = vmatprep.subr.mxu0 0.0
        %729 = vmatpush1.msra.mxu0 0.0
        %730 = vmatprep.subr.mxu0 0.0
        %731 = vmatpush1.msra.mxu0 %v698
        %732 = vmatprep.subr.mxu0 0.0
        %733 = vmatpush2.msra.mxu0 0.0
        %734 = vmatprep.subr.mxu0 0.0
        %735 = vmatpush2.msra.mxu0 0.0
        %736 = vmatprep.subr.mxu0 0.0
        %737 = vmatpush2.msra.mxu0 0.0
        %738 = vmatprep.subr.mxu0 0.0
        %739 = vmatpush2.msra.mxu0 0.0
        %740 = vmatprep.subr.mxu0 0.0
        %741 = vmatpush2.msra.mxu0 0.0
        %742 = vmatprep.subr.mxu0 0.0
        %743 = vmatpush2.msra.mxu0 0.0
        %744 = vmatprep.subr.mxu0 0.0
        %745 = vmatpush2.msra.mxu0 0.0
        %746 = vmatprep.subr.mxu0 0.0
        %747 = vmatpush2.msra.mxu0 0.0
        %748 = vmatprep.subr.mxu0 0.0
        %749 = vmatpush2.msra.mxu0 0.0
        %750 = vmatprep.subr.mxu0 0.0
        %751 = vmatpush2.msra.mxu0 0.0
        %752 = vmatprep.subr.mxu0 0.0
        %753 = vmatpush2.msra.mxu0 0.0
        %754 = vmatprep.subr.mxu0 0.0
        %755 = vmatpush2.msra.mxu0 0.0
        %756 = vmatprep.subr.mxu0 0.0
        %757 = vmatpush2.msra.mxu0 0.0
        %758 = vmatprep.subr.mxu0 0.0
        %759 = vmatpush2.msra.mxu0 0.0
        %760 = vmatprep.subr.mxu0 0.0
        %761 = vmatpush2.msra.mxu0 0.0
        %762 = vmatprep.subr.mxu0 0.0
        %763 = vmatpush2.msra.mxu0 0.0
        %764 = vmatprep.mubr.f32.mxu0 0.0
        %765 = vmatmul.mubr.f32.gmra.mxu0 %v694
        %v766 = vpop.f32.mrf.mxu0
        %v767 = vadd.f32 %v690, %v766
        %v768 = vpop.f32.mrf.mxu0
        %769 = vdwg.mxu0
        %v770 = vxor.u32 %v767, 2147483648
        %v771 = vmul.f32 %v770, 1.442695
        %v772 = vpow.pop %v771
        %v773 = vadd.f32 %v772, 1.0
        %v774 = vrcp.pop %v773
        %v775 = vmul.f32 1.0, %v774
        %v776 = vadd.f32 %v775, 1.0
        %778 = vset.pattern.permute.xlu0 0
        %779 = vperm.xlu0 %778, %v776
        %v780 = vpop.permute.xlu0 %779
        %v782 = vmul.f32 %v295, %v780
        %783 = vst [vmem:[%s287] sm:$0xff] %v782
        %784 = vset.pattern.permute.xlu0 1
        %785 = vperm.xlu0 %784, %v776
        %v786 = vpop.permute.xlu0 %785
        %v788 = vmul.f32 %v297, %v786
        %s789 = scalar_lea.vmem %s287, 8 [#allocation5]
        %790 = vst [vmem:[%s789] sm:$0xff] %v788
        %s791 = sand.u32 %s182, 1
        %s792 = scalar_lea.sflag [#allocation4], %s791
        %s793 = sand.u32 %s182, 1
        %s794 = smul.addr %s793, 16
        %s795 = scalar_lea.vmem [#allocation5], %s794
        // Predicated region
        $region53: #{tpu_custom_call.1} parent=47 // pred_check
          %p796 = pneg %p192
        $region54: #{tpu_custom_call.1} parent=47 // pred_check_branch
          %798 = sbr.rel (%p796) target = $region56
        $region55: #{tpu_custom_call.1} parent=47 // pred_region
          %s799 = smul.u32 2, %s22
          %s801 = ssub.s32 256, 256
          %802 = vsyncadd %s792, %s801
          %s803 = smul.addr %s799, 128
          %s804 = scalar_lea.hbm %s7, %s803
          %s805 = sshll.u32 %s795, 4
          %s806 = int_to_ptr.vmem [resolvable:$true] %s805
          %811 = dma.vmem_to_hbm [thread:$0]  %s806, 256, %s804, %s792, 128, 128, 8
        $region56: #{tpu_custom_call.1} parent=47 // pred_fallthru
          _
      $region48: #{tpu_custom_call.1} parent=5 // pred_fallthru
        _
      %p812 = scmp.le.s32.totalorder 2, %s17
      // Predicated region
      $region57: #{tpu_custom_call.1} parent=5 // pred_check
        %p813 = pneg %p812
      $region58: #{tpu_custom_call.1} parent=5 // pred_check_branch
        %815 = sbr.rel (%p813) target = $region60
      $region59: #{tpu_custom_call.1} parent=5 // pred_region
        %s816 = ssub.s32 %s17, 2
        // Predicated region
        $region61: #{tpu_custom_call.1} parent=59 // pred_check
          %p817 = pneg %p198
        $region62: #{tpu_custom_call.1} parent=59 // pred_check_branch
          %819 = sbr.rel (%p817) target = $region64
        $region63: #{tpu_custom_call.1} parent=59 // pred_region
          %s820 = sand.u32 %s183, 1
          %s821 = scalar_lea.sflag [#allocation4], %s820
          %s822 = sand.u32 %s183, 1
          %s823 = smul.addr %s822, 16
          %s824 = scalar_lea.vmem [#allocation5], %s823
          %825 = dma.done %s821, 256
        $region64: #{tpu_custom_call.1} parent=59 // pred_fallthru
          _
      $region60: #{tpu_custom_call.1} parent=5 // pred_fallthru
        _
    $region6: #{tpu_custom_call.1} parent=1 // loop_footer
      %s21 = sadd.s32 1, %s17
    $region7: #{tpu_custom_call.1} parent=1 // loop_footer_branch
      %16 = sbr.rel target = $region3
    $region8: #{tpu_custom_call.1} parent=1 // loop_exit
      _
    %826 = vsyncpa [#allocation3], 1
    %s827 = scalar_lea.sflag [#allocation3], 1
    %828 = vsyncpa %s827, 1
    %829 = vsyncpa [#allocation4], 1
    %s830 = scalar_lea.sflag [#allocation4], 1
    %831 = vsyncpa %s830, 1

</llo_original>
